<compile_context>
chip_gen: v7x
topology: tpu7x:2x2x1
jax: 0.10.0
libtpu: 0.0.40
codegen_flags: <defaults>
</compile_context>

<pallas_src>
import functools

import jax
import jax.numpy as jnp
from jax.experimental import pallas as pl
from jax.experimental.pallas import tpu as pltpu

# Conservative per-kernel VMEM budget: fits v7x's 64 MiB physical VMEM with
# headroom and is well under v5e/v6e's 128 MiB (we raise the scoped limit
# explicitly via vmem_limit_bytes, so the 16/32 MiB defaults don't bind).
_VMEM_BUDGET = 28 * 1024 * 1024


def _round_up(v, m):
    return (v + m - 1) // m * m


def _parallel_fused_kernel(x_ref, w_ref, b_ref, o_ref):
    # One MXU pass per (N-tile, batch-tile); f32 accumulation; lane-dense store.
    acc = jnp.dot(x_ref[...], w_ref[...], preferred_element_type=jnp.float32)
    o_ref[...] = (acc + b_ref[...]).astype(o_ref.dtype)


def _build_fused_params(weights, biases, in_features, split_size, dtype):
    """Build (D, Np) fused weight, (1, Np) f32 fused bias.  Call once, cache."""
    D = in_features
    outs = [int(w.shape[0]) for w in weights]
    ins = [int(w.shape[1]) for w in weights]
    N = sum(outs)
    itemsize = jnp.dtype(dtype).itemsize
    flops_per_row = sum(2 * i * o for i, o in zip(ins, outs))
    real_weight_bytes = sum(i * o for i, o in zip(ins, outs)) * itemsize

    if split_size is None:
        for d_i in ins:
            assert d_i == D, "split_size=None: every branch sees the full input"
        w_fused = jnp.concatenate(
            [jnp.asarray(w, dtype).T for w in weights], axis=1)
    else:
        # torch.split: chunk i = x[:, i*split : min((i+1)*split, D)]
        offsets = list(range(0, D, split_size))
        assert len(offsets) == len(weights), (
            "number of subnetworks must equal number of split chunks")
        w_fused = jnp.zeros((D, N), dtype)
        off_out = 0
        for w, off_in in zip(weights, offsets):
            o_i, d_i = int(w.shape[0]), int(w.shape[1])
            assert d_i == min(split_size, D - off_in), "chunk/in_features mismatch"
            w_fused = w_fused.at[off_in:off_in + d_i,
                                 off_out:off_out + o_i].set(
                                     jnp.asarray(w, dtype).T)
            off_out += o_i

    # Bias kept in f32 (tiny) so the add happens on the f32 accumulator.
    b_fused = jnp.concatenate(
        [jnp.asarray(b, jnp.float32).reshape(-1) for b in biases]).reshape(1, N)

    # Pad out-width to 128 lanes so every output store is an unmasked vst.
    Np = _round_up(N, 128)
    if Np != N:
        w_fused = jnp.pad(w_fused, ((0, 0), (0, Np - N)))
        b_fused = jnp.pad(b_fused, ((0, 0), (0, Np - N)))
    return w_fused, b_fused, N, flops_per_row, real_weight_bytes


@functools.partial(
    jax.jit,
    static_argnames=("N", "flops_per_row", "real_weight_bytes", "compute_dtype"))
def _fused_forward(x, w_fused, b_fused, *, N, flops_per_row, real_weight_bytes,
                   compute_dtype=None):
    out_dtype = x.dtype
    if compute_dtype is not None:
        x = x.astype(compute_dtype)          # bf16 fast path for bf16-native MXU
        w_fused = w_fused.astype(compute_dtype)

    B, D = x.shape
    dtype = x.dtype
    itemsize = jnp.dtype(dtype).itemsize
    _, Np = w_fused.shape

    # Sublane tile per dtype: 8 rows (f32), 16 (bf16), 32 (int8/fp8).
    sub = 8 * (4 // itemsize)
    Bp = _round_up(B, sub)

    # ---- N tile: full width if the resident weight fits half the budget,
    #      else stream 128-aligned column tiles (N axis outer -> weight tile
    #      stays resident across the inner batch loop, streamed once).
    if D * Np * itemsize <= _VMEM_BUDGET // 2:
        TN = Np
    else:
        TN = min(Np, max(128, ((_VMEM_BUDGET // 2) // (D * itemsize)) // 128 * 128))
    nN = pl.cdiv(Np, TN)
    w_buffers = 1 if nN == 1 else 2

    # ---- Batch tile from the remaining budget (x and out double-buffered).
    remaining = _VMEM_BUDGET - w_buffers * D * TN * itemsize - 2 * TN * 4
    per_row = 2 * D * itemsize + 2 * TN * itemsize
    TB = min(512, max(sub, (remaining // per_row) // sub * sub))
    TB = min(TB, Bp)
    # Megacore (v7x has 2 TCs): keep >= 2 batch grid steps when possible.
    if pl.cdiv(Bp, TB) < 2 and Bp >= 2 * sub:
        TB = _round_up(-(-Bp // 2), sub)
    nB = pl.cdiv(Bp, TB)

    xp = x if Bp == B else jnp.pad(x, ((0, Bp - B), (0, 0)))

    # ---- Actual VMEM usage -> explicit scoped limit (with headroom).
    vmem_bytes = (w_buffers * D * TN * itemsize
                  + 2 * TB * D * itemsize
                  + 2 * TB * TN * itemsize
                  + 2 * TN * 4)
    vmem_limit = min(64 * 1024 * 1024,
                     max(4 * 1024 * 1024, int(vmem_bytes * 3 // 2) + (1 << 20)))

    # Advisory cost: only the real (non-padded, non-zero-block) work.
    cost = pl.CostEstimate(
        flops=flops_per_row * B,
        transcendentals=0,
        bytes_accessed=(B * D * itemsize + real_weight_bytes + N * 4
                        + B * N * itemsize))

    if nN == 1:
        # Grid-invariant weight/bias: single buffer (no wasted second slab).
        w_spec = pl.BlockSpec((D, TN), lambda j, i: (0, 0),
                              pipeline_mode=pl.Buffered(1))
        b_spec = pl.BlockSpec((1, TN), lambda j, i: (0, 0),
                              pipeline_mode=pl.Buffered(1))
    else:
        w_spec = pl.BlockSpec((D, TN), lambda j, i: (0, j))
        b_spec = pl.BlockSpec((1, TN), lambda j, i: (0, j))

    out = pl.pallas_call(
        _parallel_fused_kernel,
        out_shape=jax.ShapeDtypeStruct((Bp, Np), dtype),
        grid=(nN, nB),                                   # N outer, batch inner
        in_specs=[
            pl.BlockSpec((TB, D), lambda j, i: (i, 0)),  # x: tiled over batch
            w_spec,                                      # fused weight
            b_spec,                                      # fused bias (f32)
        ],
        out_specs=pl.BlockSpec((TB, TN), lambda j, i: (i, j)),
        compiler_params=pltpu.CompilerParams(
            dimension_semantics=("parallel", "parallel"),
            vmem_limit_bytes=vmem_limit),
        cost_estimate=cost,
    )(xp, w_fused, b_fused)

    if (Bp, Np) != (B, N):
        out = out[:B, :N]                 # fuses into the jit; padded rows/cols dropped
    return out.astype(out_dtype)


def make_parallel_forward(weights, biases, in_features, split_size=None,
                          compute_dtype=None):
    """Build the fused params once and return a jitted forward fn of x.

    compute_dtype: optional lower-precision MXU dtype name (e.g. "bfloat16")
    for bf16-native MXUs; accumulation and bias add stay f32.
    """
    param_dtype = (jnp.dtype(compute_dtype) if compute_dtype is not None
                   else jnp.asarray(weights[0]).dtype)
    w_fused, b_fused, N, flops, wbytes = _build_fused_params(
        weights, biases, in_features, split_size, param_dtype)

    def fwd(x):
        return _fused_forward(x, w_fused, b_fused, N=N, flops_per_row=flops,
                              real_weight_bytes=wbytes,
                              compute_dtype=compute_dtype)
    return fwd


def parallel_forward(x, weights, biases, split_size=None, compute_dtype=None):
    """Convenience one-shot API (prefer make_parallel_forward to cache params)."""
    return make_parallel_forward(weights, biases, x.shape[-1], split_size,
                                 compute_dtype)(x)


if __name__ == "__main__":
    B, D = 8, 32
    key = jax.random.PRNGKey(0)
    ks = jax.random.split(key, 9)
    x = jax.random.normal(ks[0], (B, D), dtype=jnp.float32)

    # --- Case 1: split_size=16, branches Linear(16->24), Linear(16->8).
    split = 16
    w1 = jax.random.normal(ks[1], (24, 16), jnp.float32) * 0.1
    b1 = jax.random.normal(ks[2], (24,), jnp.float32) * 0.1
    w2 = jax.random.normal(ks[3], (8, 16), jnp.float32) * 0.1
    b2 = jax.random.normal(ks[4], (8,), jnp.float32) * 0.1
    fwd1 = make_parallel_forward([w1, w2], [b1, b2], D, split_size=split)
    y = jax.block_until_ready(fwd1(x))
    x1, x2 = x[:, :split], x[:, split:]
    y_ref = jnp.concatenate([x1 @ w1.T + b1, x2 @ w2.T + b2], axis=-1)
    assert y.shape == (B, 32)
    assert jnp.allclose(y, y_ref, atol=1e-5, rtol=1e-5)

    # --- Case 2: split_size=None, both branches see the full input.
    w1f = jax.random.normal(ks[5], (24, D), jnp.float32) * 0.1
    w2f = jax.random.normal(ks[6], (8, D), jnp.float32) * 0.1
    fwd2 = make_parallel_forward([w1f, w2f], [b1, b2], D, split_size=None)
    yn = jax.block_until_ready(fwd2(x))
    yn_ref = jnp.concatenate([x @ w1f.T + b1, x @ w2f.T + b2], axis=-1)
    assert jnp.allclose(yn, yn_ref, atol=1e-5, rtol=1e-5)

    # --- Case 3: three split chunks (12, 12, 8) — generalizes past 2 branches.
    split3 = 12
    wa = jax.random.normal(ks[7], (16, 12), jnp.float32) * 0.1
    wb = jax.random.normal(ks[8], (16, 12), jnp.float32) * 0.1
    wc = jax.random.normal(ks[1], (8, 8), jnp.float32) * 0.1
    ba = jnp.zeros((16,), jnp.float32)
    bb = jnp.ones((16,), jnp.float32) * 0.05
    bc = jnp.zeros((8,), jnp.float32)
    fwd3 = make_parallel_forward([wa, wb, wc], [ba, bb, bc], D, split_size=split3)
    y3 = jax.block_until_ready(fwd3(x))
    y3_ref = jnp.concatenate(
        [x[:, 0:12] @ wa.T + ba,
         x[:, 12:24] @ wb.T + bb,
         x[:, 24:32] @ wc.T + bc], axis=-1)
    assert y3.shape == (B, 40)
    assert jnp.allclose(y3, y3_ref, atol=1e-5, rtol=1e-5)

    # --- Case 4: bf16 fast path on the bf16-native MXU (looser tolerance).
    fwd4 = make_parallel_forward([w1, w2], [b1, b2], D, split_size=split,
                                 compute_dtype="bfloat16")
    yb = jax.block_until_ready(fwd4(x))
    assert yb.shape == (B, 32) and yb.dtype == x.dtype
    assert jnp.allclose(yb, y_ref, atol=5e-2, rtol=5e-2)

    print("KERNEL_OK")
</pallas_src>

<mosaic_0001>
module attributes {stable_mosaic.version = 11 : i64} {
  func.func @_parallel_fused_kernel(%arg0: i32, %arg1: i32, %arg2: memref<8x32xf32, #tpu.memory_space<vmem>>, %arg3: memref<32x128xf32, #tpu.memory_space<vmem>>, %arg4: memref<1x128xf32, #tpu.memory_space<vmem>>, %arg5: memref<8x128xf32, #tpu.memory_space<vmem>>) attributes {dimension_semantics = [#tpu.dimension_semantics<parallel>, #tpu.dimension_semantics<parallel>], iteration_bounds = array<i64: 1, 1>, scalar_prefetch = 0 : i64, scratch_operands = 0 : i64, tpu.core_type = #tpu.core_type<tc>, window_params = [{transform_indices = @transform_0, window_bounds = array<i64: 8, 32>}, {pipeline_mode = #tpu.pipeline_mode<synchronous>, transform_indices = @transform_1, window_bounds = array<i64: 32, 128>}, {pipeline_mode = #tpu.pipeline_mode<synchronous>, transform_indices = @transform_2, window_bounds = array<i64: 1, 128>}, {transform_indices = @transform_3, window_bounds = array<i64: 8, 128>}]} {
    %c0 = arith.constant 0 : index
    %c0_0 = arith.constant 0 : index
    %0 = vector.load %arg2[%c0, %c0_0] : memref<8x32xf32, #tpu.memory_space<vmem>>, vector<8x32xf32>
    %c0_1 = arith.constant 0 : index
    %c0_2 = arith.constant 0 : index
    %1 = vector.load %arg3[%c0_1, %c0_2] : memref<32x128xf32, #tpu.memory_space<vmem>>, vector<32x128xf32>
    %cst = arith.constant dense<0.000000e+00> : vector<8x128xf32>
    %2 = tpu.matmul %0, %1, %cst {dimension_numbers = #tpu.dot_dimension_numbers<[1], [0], [0], [1], [0, 0, 1, 1], [], []>} : vector<8x32xf32>, vector<32x128xf32>, vector<8x128xf32> -> vector<8x128xf32>
    %c0_3 = arith.constant 0 : index
    %c0_4 = arith.constant 0 : index
    %3 = vector.load %arg4[%c0_3, %c0_4] : memref<1x128xf32, #tpu.memory_space<vmem>>, vector<1x128xf32>
    %4 = vector.broadcast %3 : vector<1x128xf32> to vector<8x128xf32>
    %5 = arith.addf %2, %4 : vector<8x128xf32>
    %c0_5 = arith.constant 0 : index
    %c0_6 = arith.constant 0 : index
    %6 = vector.load %arg5[%c0_5, %c0_6] : memref<8x128xf32, #tpu.memory_space<vmem>>, vector<8x128xf32>
    tpu.vector_store %arg5[%c0_5, %c0_6], %5 {strides = array<i32>} : memref<8x128xf32, #tpu.memory_space<vmem>>, vector<8x128xf32>,
    return
  }
  func.func @transform_0(%arg0: i32, %arg1: i32) -> (i32, i32) {
    %c0_i32 = arith.constant 0 : i32
    %c0_i32_0 = arith.constant 0 : i32
    return %arg1, %c0_i32 : i32, i32
  }
  func.func @transform_1(%arg0: i32, %arg1: i32) -> (i32, i32) {
    %c0_i32 = arith.constant 0 : i32
    %c0_i32_0 = arith.constant 0 : i32
    %c0_i32_1 = arith.constant 0 : i32
    return %c0_i32, %c0_i32_0 : i32, i32
  }
  func.func @transform_2(%arg0: i32, %arg1: i32) -> (i32, i32) {
    %c0_i32 = arith.constant 0 : i32
    %c0_i32_0 = arith.constant 0 : i32
    %c0_i32_1 = arith.constant 0 : i32
    return %c0_i32, %c0_i32_0 : i32, i32
  }
  func.func @transform_3(%arg0: i32, %arg1: i32) -> (i32, i32) {
    %c0_i32 = arith.constant 0 : i32
    return %arg1, %arg0 : i32, i32
  }
}

</mosaic_0001>

<llo_original>
// kernel: _fused_forward.1
$region0: #{_fused_forward.1}
  #allocation0 [shape = 'u32[]', space=smem, size = 0x4, offset = 0x4, fixed_abs, tag = 'smem constant byte address 0x4 - core index']
  #allocation1 [shape = 'u32[144,128]{1,0:T(1,128)}', space=vmem, size = 0x12000, scoped, tag = 'internal scratch']
  %s0 = inlined_call_operand.hbm [shape: f32[8,32], index: 0, kind: input, shape index: {}]
  %s1 = inlined_call_operand.hbm [shape: f32[32,128], index: 1, kind: input, shape index: {}]
  %s2 = inlined_call_operand.vmem [shape: f32[1,128], index: 2, kind: input, shape index: {}]
  %s3 = inlined_call_operand.hbm [shape: f32[8,128], index: 3, kind: output, shape index: {}]
  %s4 = sld [smem:[#allocation0]]
  $region30: #{_fused_forward.1} parent=0
    _
  %s6 = ssub.s32 1, %s4
  %s7 = scalar_select 0, %s6, %s4
  $region1: #{_fused_forward.1} parent=0
    #allocation2 [shape = 'u8[4096]{0}', space=vmem, size = 0x1000, scoped, tag = 'input window, operand 0, single buffered']
    #allocation3 [shape = 's32[1]{0}', space=sflag, size = 0x4, scoped, tag = 'scoped memory for _fused_forward.1']
    #allocation4 [shape = 's32[1]{0}', space=sflag, size = 0x4, scoped, tag = 'scoped memory for _fused_forward.1']
    #allocation5 [shape = 'u8[16384]{0}', space=vmem, size = 0x4000, scoped, tag = 'input window, operand 1, single buffered']
    #allocation6 [shape = 's32[1]{0}', space=sflag, size = 0x4, scoped, tag = 'scoped memory for _fused_forward.1']
    #allocation7 [shape = 'u8[4096]{0}', space=vmem, size = 0x1000, scoped, tag = 'output window, operand 0, single buffered']
    %8 = vsyncpa [#allocation3], 0
    %9 = vsyncpa [#allocation6], 0
    %10 = vsyncpa [#allocation4], 0
    // Predicated region
    $region2: #{_fused_forward.1} parent=1 // pred_check
      _
    $region3: #{_fused_forward.1} parent=1 // pred_check_branch
      %12 = sbr.rel (0) target = $region5
    $region4: #{_fused_forward.1} parent=1 // pred_region
      %s14 = ssub.s32 128, 128
      %15 = vsyncadd [#allocation3], %s14
      %s17 = sshll.u32 [#allocation2], 4
      %s18 = int_to_ptr.vmem [resolvable:$true] %s17
      %20 = dma.hbm_to_vmem [thread:$0]  %s0, 128, %s18, [#allocation3]
    $region5: #{_fused_forward.1} parent=1 // pred_fallthru
      _
    // Predicated region
    $region6: #{_fused_forward.1} parent=1 // pred_check
      _
    $region7: #{_fused_forward.1} parent=1 // pred_check_branch
      %22 = sbr.rel (0) target = $region9
    $region8: #{_fused_forward.1} parent=1 // pred_region
      %s24 = ssub.s32 512, 512
      %25 = vsyncadd [#allocation6], %s24
      %s26 = sshll.u32 [#allocation5], 4
      %s27 = int_to_ptr.vmem [resolvable:$true] %s26
      %32 = dma.hbm_to_vmem [thread:$0]  %s1, 512, %s27, [#allocation6], 128, 128, 8
    $region9: #{_fused_forward.1} parent=1 // pred_fallthru
      _
    // Predicated region
    $region10: #{_fused_forward.1} parent=1 // pred_check
      _
    $region11: #{_fused_forward.1} parent=1 // pred_check_branch
      %34 = sbr.rel (0) target = $region13
    $region12: #{_fused_forward.1} parent=1 // pred_region
      _
    $region13: #{_fused_forward.1} parent=1 // pred_fallthru
      _
    // Predicated region
    $region14: #{_fused_forward.1} parent=1 // pred_check
      _
    $region15: #{_fused_forward.1} parent=1 // pred_check_branch
      %36 = sbr.rel (0) target = $region17
    $region16: #{_fused_forward.1} parent=1 // pred_region
      %37 = dma.done [#allocation3], 128
    $region17: #{_fused_forward.1} parent=1 // pred_fallthru
      _
    // Predicated region
    $region18: #{_fused_forward.1} parent=1 // pred_check
      _
    $region19: #{_fused_forward.1} parent=1 // pred_check_branch
      %39 = sbr.rel (0) target = $region21
    $region20: #{_fused_forward.1} parent=1 // pred_region
      %40 = dma.done [#allocation6], 512
    $region21: #{_fused_forward.1} parent=1 // pred_fallthru
      _
    %v41 = vld [vmem:[#allocation2] sm:$0xff]
    %v42 = vld [vmem:[#allocation5] sm:$0xff]
    %v43 = vld [vmem:[#allocation5 + $0x8] sm:$0xff]
    %v44 = vld [vmem:[#allocation5 + $0x10] sm:$0xff]
    %v45 = vld [vmem:[#allocation5 + $0x18] sm:$0xff]
    %v46 = vld [vmem:[%s2] sm:$0x1]
    %v48 = vlaneseq
    %v49 = vshrl.u32 %v48, 7
    %v50 = vsub.s32 0, %v49
    %v51 = vrot.slane %v46, %v50
    %vm53 = vcmask 261120
    %v55 = vsel %vm53, %v41, 0
    %57 = vmatprep.subr.mxu0 0.0
    %58 = vmatpush1.msra.mxu0 %v42
    %59 = vmatprep.subr.mxu0 0.0
    %60 = vmatpush1.msra.mxu0 %v43
    %61 = vmatprep.subr.mxu0 0.0
    %62 = vmatpush1.msra.mxu0 %v44
    %63 = vmatprep.subr.mxu0 0.0
    %64 = vmatpush1.msra.mxu0 %v45
    %65 = vmatprep.subr.mxu0 0.0
    %66 = vmatpush1.msra.mxu0 0.0
    %67 = vmatprep.subr.mxu0 0.0
    %68 = vmatpush1.msra.mxu0 0.0
    %69 = vmatprep.subr.mxu0 0.0
    %70 = vmatpush1.msra.mxu0 0.0
    %71 = vmatprep.subr.mxu0 0.0
    %72 = vmatpush1.msra.mxu0 0.0
    %73 = vmatprep.subr.mxu0 0.0
    %74 = vmatpush1.msra.mxu0 0.0
    %75 = vmatprep.subr.mxu0 0.0
    %76 = vmatpush1.msra.mxu0 0.0
    %77 = vmatprep.subr.mxu0 0.0
    %78 = vmatpush1.msra.mxu0 0.0
    %79 = vmatprep.subr.mxu0 0.0
    %80 = vmatpush1.msra.mxu0 0.0
    %81 = vmatprep.subr.mxu0 0.0
    %82 = vmatpush1.msra.mxu0 0.0
    %83 = vmatprep.subr.mxu0 0.0
    %84 = vmatpush1.msra.mxu0 0.0
    %85 = vmatprep.subr.mxu0 0.0
    %86 = vmatpush1.msra.mxu0 0.0
    %87 = vmatprep.subr.mxu0 0.0
    %88 = vmatpush1.msra.mxu0 0.0
    %89 = vmatprep.subr.mxu0 0.0
    %90 = vmatpush1.msra.mxu0 0.0
    %91 = vmatprep.subr.mxu0 0.0
    %92 = vmatpush1.msra.mxu0 0.0
    %93 = vmatprep.subr.mxu0 0.0
    %94 = vmatpush1.msra.mxu0 0.0
    %95 = vmatprep.subr.mxu0 0.0
    %96 = vmatpush1.msra.mxu0 0.0
    %97 = vmatprep.subr.mxu0 0.0
    %98 = vmatpush1.msra.mxu0 0.0
    %99 = vmatprep.subr.mxu0 0.0
    %100 = vmatpush1.msra.mxu0 0.0
    %101 = vmatprep.subr.mxu0 0.0
    %102 = vmatpush1.msra.mxu0 0.0
    %103 = vmatprep.subr.mxu0 0.0
    %104 = vmatpush1.msra.mxu0 0.0
    %105 = vmatprep.subr.mxu0 0.0
    %106 = vmatpush1.msra.mxu0 0.0
    %107 = vmatprep.subr.mxu0 0.0
    %108 = vmatpush1.msra.mxu0 0.0
    %109 = vmatprep.subr.mxu0 0.0
    %110 = vmatpush1.msra.mxu0 0.0
    %111 = vmatprep.subr.mxu0 0.0
    %112 = vmatpush1.msra.mxu0 0.0
    %113 = vmatprep.subr.mxu0 0.0
    %114 = vmatpush1.msra.mxu0 0.0
    %115 = vmatprep.subr.mxu0 0.0
    %116 = vmatpush1.msra.mxu0 0.0
    %117 = vmatprep.subr.mxu0 0.0
    %118 = vmatpush1.msra.mxu0 0.0
    %119 = vmatprep.subr.mxu0 0.0
    %120 = vmatpush1.msra.mxu0 0.0
    %121 = vmatprep.mubr.f32.mxu0 0.0
    %122 = vmatmul.mubr.f32.gmra.mrb[0].mxu0 %v55
    %v123 = vpop.f32.mrb[0].mxu0
    %v124 = vadd.f32 %v51, %v123
    %v125 = vpop.f32.mrb[0].mxu0
    %126 = vdwg.mxu0
    %127 = vst [vmem:[#allocation7] sm:$0xff] %v124
    // Predicated region
    $region22: #{_fused_forward.1} parent=1 // pred_check
      _
    $region23: #{_fused_forward.1} parent=1 // pred_check_branch
      %129 = sbr.rel (0) target = $region25
    $region24: #{_fused_forward.1} parent=1 // pred_region
      %s131 = ssub.s32 128, 128
      %132 = vsyncadd [#allocation4], %s131
      %s134 = sshll.u32 [#allocation7], 4
      %s135 = int_to_ptr.vmem [resolvable:$true] %s134
      %137 = dma.vmem_to_hbm [thread:$0]  %s135, 128, %s3, [#allocation4]
    $region25: #{_fused_forward.1} parent=1 // pred_fallthru
      _
    // Predicated region
    $region26: #{_fused_forward.1} parent=1 // pred_check
      _
    $region27: #{_fused_forward.1} parent=1 // pred_check_branch
      %139 = sbr.rel (0) target = $region29
    $region28: #{_fused_forward.1} parent=1 // pred_region
      %140 = dma.done [#allocation4], 128
    $region29: #{_fused_forward.1} parent=1 // pred_fallthru
      _
    %141 = vsyncpa [#allocation3], 1
    %142 = vsyncpa [#allocation6], 1
    %143 = vsyncpa [#allocation4], 1

</llo_original>
